<compile_context>
chip_gen: v5e
topology: v5e:2x2
jax: 0.10.0
libtpu: 0.0.40
codegen_flags: <defaults>
</compile_context>

<pallas_src>
import functools

import jax
import jax.numpy as jnp
import numpy as np
from jax.experimental import pallas as pl
from jax.experimental.pallas import tpu as pltpu


def make_kernel(k):
    """Same semantics as the PyTorch make_kernel (deterministic, no checkpoint)."""
    k = np.asarray(k, dtype=np.float32)
    if k.ndim == 1:
        k = k[None, :] * k[:, None]
    k = k / k.sum()
    return k


def _downsample_kernel(xph_ref, o_ref, *, taps, d, Ho, Wo, TH):
    # xph_ref: (B, d*d, Hq, Wq)  NC-major polyphase-split padded input, VMEM
    # o_ref  : (B, Ho, Wo)       output tile, VMEM
    #
    # out[b, oy, ox] = sum_{ky,kx} w_flip[ky,kx] * x_pad[b, d*oy + ky, d*ox + kx]
    # with ky = d*qy + ry, kx = d*qx + rx, so every read below is a contiguous
    # (B, th, Wo) window of one phase plane.  FIR taps are Python constants.
    B = o_ref.shape[0]
    for oy0 in range(0, Ho, TH):                 # acc row-chunking (stays in vregs)
        th = min(TH, Ho - oy0)
        acc = jnp.zeros((B, th, Wo), jnp.float32)
        for ry, rx, qy, qx, wv in taps:
            win = xph_ref[:, ry * d + rx,
                          oy0 + qy: oy0 + qy + th,
                          qx: qx + Wo]
            acc = acc + wv * win.astype(jnp.float32)
        o_ref[:, oy0: oy0 + th, :] = acc.astype(o_ref.dtype)


def downsample(x, kernel_1d=(1, 3, 3, 1), factor=2):
    """Pallas equivalent of Downsample(kernel_1d, factor).forward(x), x in NCHW."""
    k = make_kernel(kernel_1d)                    # (K, K), normalized
    K = k.shape[0]
    d = factor
    p = K - d
    pad0, pad1 = (p + 1) // 2, p // 2

    N, C, H, W = x.shape
    Hp, Wp = H + pad0 + pad1, W + pad0 + pad1
    Ho = (Hp - K) // d + 1
    Wo = (Wp - K) // d + 1
    NC = N * C
    Hq, Wq = -(-Hp // d), -(-Wp // d)             # ceil

    # --- host glue: single pad + NC-major polyphase layout ---------------------
    xp = jnp.pad(
        x.reshape(NC, H, W),
        ((0, 0),
         (pad0, pad1 + (Hq * d - Hp)),
         (pad0, pad1 + (Wq * d - Wp))))
    # xph[nc, ry*d+rx, i, j] == x_pad[nc, i*d + ry, j*d + rx]  (contiguous per image)
    xph = (xp.reshape(NC, Hq, d, Wq, d)
             .transpose(0, 2, 4, 1, 3)
             .reshape(NC, d * d, Hq, Wq))
    # TODO(synk): the pad+transpose above is one extra HBM pass; fusing it into the
    # kernel (in-kernel sublane-strided phase split) would halve end-to-end traffic.

    # upfirdn2d uses true convolution (flipped kernel); bake taps as constants.
    wf = np.flip(np.asarray(k), (0, 1))
    taps = []
    for ry in range(d):
        for rx in range(d):
            for qy in range((K - ry + d - 1) // d):
                for qx in range((K - rx + d - 1) // d):
                    wv = float(wf[qy * d + ry, qx * d + rx])
                    if wv != 0.0:
                        taps.append((ry, rx, qy, qx, wv))
    taps = tuple(taps)

    # --- choose batch B per grid step from a conservative VMEM budget ----------
    def rup(a, m):
        return -(-a // m) * m

    in_bytes = d * d * rup(Hq, 8) * rup(Wq, 128) * 4      # padded VMEM footprint/img
    out_bytes = rup(Ho, 8) * rup(Wo, 128) * 4
    per_img = in_bytes + out_bytes
    budget = 12 * 1024 * 1024                              # single-copy; x2 dbl-buf
    max_b = max(1, budget // per_img)
    cap = min(max_b, max(1, NC // 2))                      # keep grid >= 2 (v7x 2 TCs)
    B = 1
    for cand in range(1, int(cap) + 1):                    # largest divisor of NC
        if NC % cand == 0:
            B = cand

    # acc row-chunk size: keep B*TH*Wo f32 accumulator comfortably in vregs
    TH = Ho
    while B * TH * rup(Wo, 128) * 4 > 64 * 1024 and TH > 8:
        TH = max(8, TH // 2)

    kern = functools.partial(_downsample_kernel, taps=taps, d=d, Ho=Ho, Wo=Wo, TH=TH)
    out = pl.pallas_call(
        kern,
        out_shape=jax.ShapeDtypeStruct((NC, Ho, Wo), x.dtype),
        grid=(NC // B,),
        in_specs=[pl.BlockSpec((B, d * d, Hq, Wq), lambda i: (i, 0, 0, 0))],
        out_specs=pl.BlockSpec((B, Ho, Wo), lambda i: (i, 0, 0)),
        compiler_params=pltpu.CompilerParams(
            dimension_semantics=("parallel",),
            vmem_limit_bytes=48 * 1024 * 1024),
    )(xph)
    return out.reshape(N, C, Ho, Wo)


def _reference_downsample(x, kernel_1d=(1, 3, 3, 1), factor=2):
    """Pure-JAX reference replicating upfirdn2d(input, k, up=1, down=factor, pad)."""
    k = jnp.asarray(make_kernel(kernel_1d))
    K = k.shape[0]
    d = factor
    p = K - d
    pad0, pad1 = (p + 1) // 2, p // 2
    N, C, H, W = x.shape
    xp = jnp.pad(x, ((0, 0), (0, 0), (pad0, pad1), (pad0, pad1)))
    wf = jnp.flip(k, (0, 1))[None, None]  # OIHW
    out = jax.lax.conv_general_dilated(
        xp.reshape(N * C, 1, H + p, W + p), wf, (d, d), "VALID",
        dimension_numbers=("NCHW", "OIHW", "NCHW"))
    Ho = (H + p - K) // d + 1
    Wo = (W + p - K) // d + 1
    return out.reshape(N, C, Ho, Wo)


if __name__ == "__main__":
    key = jax.random.PRNGKey(0)
    x = jax.random.normal(key, (2, 4, 16, 16), dtype=jnp.float32)

    y = downsample(x, kernel_1d=(1, 3, 3, 1), factor=2)
    y = jax.block_until_ready(y)

    y_ref = _reference_downsample(x, kernel_1d=(1, 3, 3, 1), factor=2)
    assert y.shape == (2, 4, 8, 8), y.shape
    np.testing.assert_allclose(np.asarray(y), np.asarray(y_ref), rtol=1e-5, atol=1e-5)
    print("KERNEL_OK")
</pallas_src>

<mosaic_0001>
module attributes {stable_mosaic.version = 11 : i64} {
  func.func @_downsample_kernel(%arg0: i32, %arg1: memref<4x4x9x9xf32, #tpu.memory_space<vmem>>, %arg2: memref<4x8x8xf32, #tpu.memory_space<vmem>>) attributes {dimension_semantics = [#tpu.dimension_semantics<parallel>], iteration_bounds = array<i64: 2>, scalar_prefetch = 0 : i64, scratch_operands = 0 : i64, tpu.core_type = #tpu.core_type<tc>, window_params = [{transform_indices = @transform_0, window_bounds = array<i64: 4, 4, 9, 9>}, {transform_indices = @transform_1, window_bounds = array<i64: 4, 8, 8>}]} {
    %cst = arith.constant 0.000000e+00 : f32
    %0 = vector.broadcast %cst : f32 to vector<4x8x8xf32>
    %c0 = arith.constant 0 : index
    %c0_0 = arith.constant 0 : index
    %c0_1 = arith.constant 0 : index
    %c0_2 = arith.constant 0 : index
    %1 = vector.load %arg1[%c0, %c0_0, %c0_1, %c0_2] : memref<4x4x9x9xf32, #tpu.memory_space<vmem>>, vector<4x1x8x8xf32>
    %2 = vector.shape_cast %1 : vector<4x1x8x8xf32> to vector<4x8x8xf32>
    %cst_3 = arith.constant 1.562500e-02 : f32
    %3 = vector.broadcast %cst_3 : f32 to vector<4x8x8xf32>
    %4 = arith.mulf %3, %2 : vector<4x8x8xf32>
    %5 = arith.addf %0, %4 : vector<4x8x8xf32>
    %c0_4 = arith.constant 0 : index
    %c0_5 = arith.constant 0 : index
    %c0_6 = arith.constant 0 : index
    %c1 = arith.constant 1 : index
    %6 = vector.load %arg1[%c0_4, %c0_5, %c0_6, %c1] : memref<4x4x9x9xf32, #tpu.memory_space<vmem>>, vector<4x1x8x8xf32>
    %7 = vector.shape_cast %6 : vector<4x1x8x8xf32> to vector<4x8x8xf32>
    %cst_7 = arith.constant 4.687500e-02 : f32
    %8 = vector.broadcast %cst_7 : f32 to vector<4x8x8xf32>
    %9 = arith.mulf %8, %7 : vector<4x8x8xf32>
    %10 = arith.addf %5, %9 : vector<4x8x8xf32>
    %c0_8 = arith.constant 0 : index
    %c0_9 = arith.constant 0 : index
    %c1_10 = arith.constant 1 : index
    %c0_11 = arith.constant 0 : index
    %11 = vector.load %arg1[%c0_8, %c0_9, %c1_10, %c0_11] : memref<4x4x9x9xf32, #tpu.memory_space<vmem>>, vector<4x1x8x8xf32>
    %12 = vector.shape_cast %11 : vector<4x1x8x8xf32> to vector<4x8x8xf32>
    %cst_12 = arith.constant 4.687500e-02 : f32
    %13 = vector.broadcast %cst_12 : f32 to vector<4x8x8xf32>
    %14 = arith.mulf %13, %12 : vector<4x8x8xf32>
    %15 = arith.addf %10, %14 : vector<4x8x8xf32>
    %c0_13 = arith.constant 0 : index
    %c0_14 = arith.constant 0 : index
    %c1_15 = arith.constant 1 : index
    %c1_16 = arith.constant 1 : index
    %16 = vector.load %arg1[%c0_13, %c0_14, %c1_15, %c1_16] : memref<4x4x9x9xf32, #tpu.memory_space<vmem>>, vector<4x1x8x8xf32>
    %17 = vector.shape_cast %16 : vector<4x1x8x8xf32> to vector<4x8x8xf32>
    %cst_17 = arith.constant 1.406250e-01 : f32
    %18 = vector.broadcast %cst_17 : f32 to vector<4x8x8xf32>
    %19 = arith.mulf %18, %17 : vector<4x8x8xf32>
    %20 = arith.addf %15, %19 : vector<4x8x8xf32>
    %c0_18 = arith.constant 0 : index
    %c1_19 = arith.constant 1 : index
    %c0_20 = arith.constant 0 : index
    %c0_21 = arith.constant 0 : index
    %21 = vector.load %arg1[%c0_18, %c1_19, %c0_20, %c0_21] : memref<4x4x9x9xf32, #tpu.memory_space<vmem>>, vector<4x1x8x8xf32>
    %22 = vector.shape_cast %21 : vector<4x1x8x8xf32> to vector<4x8x8xf32>
    %cst_22 = arith.constant 4.687500e-02 : f32
    %23 = vector.broadcast %cst_22 : f32 to vector<4x8x8xf32>
    %24 = arith.mulf %23, %22 : vector<4x8x8xf32>
    %25 = arith.addf %20, %24 : vector<4x8x8xf32>
    %c0_23 = arith.constant 0 : index
    %c1_24 = arith.constant 1 : index
    %c0_25 = arith.constant 0 : index
    %c1_26 = arith.constant 1 : index
    %26 = vector.load %arg1[%c0_23, %c1_24, %c0_25, %c1_26] : memref<4x4x9x9xf32, #tpu.memory_space<vmem>>, vector<4x1x8x8xf32>
    %27 = vector.shape_cast %26 : vector<4x1x8x8xf32> to vector<4x8x8xf32>
    %cst_27 = arith.constant 1.562500e-02 : f32
    %28 = vector.broadcast %cst_27 : f32 to vector<4x8x8xf32>
    %29 = arith.mulf %28, %27 : vector<4x8x8xf32>
    %30 = arith.addf %25, %29 : vector<4x8x8xf32>
    %c0_28 = arith.constant 0 : index
    %c1_29 = arith.constant 1 : index
    %c1_30 = arith.constant 1 : index
    %c0_31 = arith.constant 0 : index
    %31 = vector.load %arg1[%c0_28, %c1_29, %c1_30, %c0_31] : memref<4x4x9x9xf32, #tpu.memory_space<vmem>>, vector<4x1x8x8xf32>
    %32 = vector.shape_cast %31 : vector<4x1x8x8xf32> to vector<4x8x8xf32>
    %cst_32 = arith.constant 1.406250e-01 : f32
    %33 = vector.broadcast %cst_32 : f32 to vector<4x8x8xf32>
    %34 = arith.mulf %33, %32 : vector<4x8x8xf32>
    %35 = arith.addf %30, %34 : vector<4x8x8xf32>
    %c0_33 = arith.constant 0 : index
    %c1_34 = arith.constant 1 : index
    %c1_35 = arith.constant 1 : index
    %c1_36 = arith.constant 1 : index
    %36 = vector.load %arg1[%c0_33, %c1_34, %c1_35, %c1_36] : memref<4x4x9x9xf32, #tpu.memory_space<vmem>>, vector<4x1x8x8xf32>
    %37 = vector.shape_cast %36 : vector<4x1x8x8xf32> to vector<4x8x8xf32>
    %cst_37 = arith.constant 4.687500e-02 : f32
    %38 = vector.broadcast %cst_37 : f32 to vector<4x8x8xf32>
    %39 = arith.mulf %38, %37 : vector<4x8x8xf32>
    %40 = arith.addf %35, %39 : vector<4x8x8xf32>
    %c0_38 = arith.constant 0 : index
    %c2 = arith.constant 2 : index
    %c0_39 = arith.constant 0 : index
    %c0_40 = arith.constant 0 : index
    %41 = vector.load %arg1[%c0_38, %c2, %c0_39, %c0_40] : memref<4x4x9x9xf32, #tpu.memory_space<vmem>>, vector<4x1x8x8xf32>
    %42 = vector.shape_cast %41 : vector<4x1x8x8xf32> to vector<4x8x8xf32>
    %cst_41 = arith.constant 4.687500e-02 : f32
    %43 = vector.broadcast %cst_41 : f32 to vector<4x8x8xf32>
    %44 = arith.mulf %43, %42 : vector<4x8x8xf32>
    %45 = arith.addf %40, %44 : vector<4x8x8xf32>
    %c0_42 = arith.constant 0 : index
    %c2_43 = arith.constant 2 : index
    %c0_44 = arith.constant 0 : index
    %c1_45 = arith.constant 1 : index
    %46 = vector.load %arg1[%c0_42, %c2_43, %c0_44, %c1_45] : memref<4x4x9x9xf32, #tpu.memory_space<vmem>>, vector<4x1x8x8xf32>
    %47 = vector.shape_cast %46 : vector<4x1x8x8xf32> to vector<4x8x8xf32>
    %cst_46 = arith.constant 1.406250e-01 : f32
    %48 = vector.broadcast %cst_46 : f32 to vector<4x8x8xf32>
    %49 = arith.mulf %48, %47 : vector<4x8x8xf32>
    %50 = arith.addf %45, %49 : vector<4x8x8xf32>
    %c0_47 = arith.constant 0 : index
    %c2_48 = arith.constant 2 : index
    %c1_49 = arith.constant 1 : index
    %c0_50 = arith.constant 0 : index
    %51 = vector.load %arg1[%c0_47, %c2_48, %c1_49, %c0_50] : memref<4x4x9x9xf32, #tpu.memory_space<vmem>>, vector<4x1x8x8xf32>
    %52 = vector.shape_cast %51 : vector<4x1x8x8xf32> to vector<4x8x8xf32>
    %cst_51 = arith.constant 1.562500e-02 : f32
    %53 = vector.broadcast %cst_51 : f32 to vector<4x8x8xf32>
    %54 = arith.mulf %53, %52 : vector<4x8x8xf32>
    %55 = arith.addf %50, %54 : vector<4x8x8xf32>
    %c0_52 = arith.constant 0 : index
    %c2_53 = arith.constant 2 : index
    %c1_54 = arith.constant 1 : index
    %c1_55 = arith.constant 1 : index
    %56 = vector.load %arg1[%c0_52, %c2_53, %c1_54, %c1_55] : memref<4x4x9x9xf32, #tpu.memory_space<vmem>>, vector<4x1x8x8xf32>
    %57 = vector.shape_cast %56 : vector<4x1x8x8xf32> to vector<4x8x8xf32>
    %cst_56 = arith.constant 4.687500e-02 : f32
    %58 = vector.broadcast %cst_56 : f32 to vector<4x8x8xf32>
    %59 = arith.mulf %58, %57 : vector<4x8x8xf32>
    %60 = arith.addf %55, %59 : vector<4x8x8xf32>
    %c0_57 = arith.constant 0 : index
    %c3 = arith.constant 3 : index
    %c0_58 = arith.constant 0 : index
    %c0_59 = arith.constant 0 : index
    %61 = vector.load %arg1[%c0_57, %c3, %c0_58, %c0_59] : memref<4x4x9x9xf32, #tpu.memory_space<vmem>>, vector<4x1x8x8xf32>
    %62 = vector.shape_cast %61 : vector<4x1x8x8xf32> to vector<4x8x8xf32>
    %cst_60 = arith.constant 1.406250e-01 : f32
    %63 = vector.broadcast %cst_60 : f32 to vector<4x8x8xf32>
    %64 = arith.mulf %63, %62 : vector<4x8x8xf32>
    %65 = arith.addf %60, %64 : vector<4x8x8xf32>
    %c0_61 = arith.constant 0 : index
    %c3_62 = arith.constant 3 : index
    %c0_63 = arith.constant 0 : index
    %c1_64 = arith.constant 1 : index
    %66 = vector.load %arg1[%c0_61, %c3_62, %c0_63, %c1_64] : memref<4x4x9x9xf32, #tpu.memory_space<vmem>>, vector<4x1x8x8xf32>
    %67 = vector.shape_cast %66 : vector<4x1x8x8xf32> to vector<4x8x8xf32>
    %cst_65 = arith.constant 4.687500e-02 : f32
    %68 = vector.broadcast %cst_65 : f32 to vector<4x8x8xf32>
    %69 = arith.mulf %68, %67 : vector<4x8x8xf32>
    %70 = arith.addf %65, %69 : vector<4x8x8xf32>
    %c0_66 = arith.constant 0 : index
    %c3_67 = arith.constant 3 : index
    %c1_68 = arith.constant 1 : index
    %c0_69 = arith.constant 0 : index
    %71 = vector.load %arg1[%c0_66, %c3_67, %c1_68, %c0_69] : memref<4x4x9x9xf32, #tpu.memory_space<vmem>>, vector<4x1x8x8xf32>
    %72 = vector.shape_cast %71 : vector<4x1x8x8xf32> to vector<4x8x8xf32>
    %cst_70 = arith.constant 4.687500e-02 : f32
    %73 = vector.broadcast %cst_70 : f32 to vector<4x8x8xf32>
    %74 = arith.mulf %73, %72 : vector<4x8x8xf32>
    %75 = arith.addf %70, %74 : vector<4x8x8xf32>
    %c0_71 = arith.constant 0 : index
    %c3_72 = arith.constant 3 : index
    %c1_73 = arith.constant 1 : index
    %c1_74 = arith.constant 1 : index
    %76 = vector.load %arg1[%c0_71, %c3_72, %c1_73, %c1_74] : memref<4x4x9x9xf32, #tpu.memory_space<vmem>>, vector<4x1x8x8xf32>
    %77 = vector.shape_cast %76 : vector<4x1x8x8xf32> to vector<4x8x8xf32>
    %cst_75 = arith.constant 1.562500e-02 : f32
    %78 = vector.broadcast %cst_75 : f32 to vector<4x8x8xf32>
    %79 = arith.mulf %78, %77 : vector<4x8x8xf32>
    %80 = arith.addf %75, %79 : vector<4x8x8xf32>
    %c0_76 = arith.constant 0 : index
    %c0_77 = arith.constant 0 : index
    %c0_78 = arith.constant 0 : index
    %81 = vector.load %arg2[%c0_76, %c0_77, %c0_78] : memref<4x8x8xf32, #tpu.memory_space<vmem>>, vector<4x8x8xf32>
    tpu.vector_store %arg2[%c0_76, %c0_77, %c0_78], %80 {strides = array<i32>} : memref<4x8x8xf32, #tpu.memory_space<vmem>>, vector<4x8x8xf32>,
    return
  }
  func.func @transform_0(%arg0: i32) -> (i32, i32, i32, i32) {
    %c0_i32 = arith.constant 0 : i32
    %c0_i32_0 = arith.constant 0 : i32
    %c0_i32_1 = arith.constant 0 : i32
    %c0_i32_2 = arith.constant 0 : i32
    return %arg0, %c0_i32, %c0_i32_0, %c0_i32_1 : i32, i32, i32, i32
  }
  func.func @transform_1(%arg0: i32) -> (i32, i32, i32) {
    %c0_i32 = arith.constant 0 : i32
    %c0_i32_0 = arith.constant 0 : i32
    %c0_i32_1 = arith.constant 0 : i32
    return %arg0, %c0_i32, %c0_i32_0 : i32, i32, i32
  }
}

</mosaic_0001>

<llo_original>
// kernel: tpu_custom_call.1
$region0: #{tpu_custom_call.1}
  #allocation0 [shape = 'u32[]', space=smem, size = 0x4, offset = 0x4, fixed_abs, tag = 'smem constant byte address 0x4 - core index']
  #allocation1 [shape = 'u32[72,128]{1,0:T(1,128)}', space=vmem, size = 0x9000, scoped, tag = 'internal scratch']
  %s0 = inlined_call_operand.vmem [shape: f32[8,4,9,9], index: 0, kind: input, shape index: {}]
  %s1 = inlined_call_operand.hbm [shape: f32[8,8,8], index: 1, kind: output, shape index: {}]
  %s2 = sld [smem:[#allocation0]]
  $region37: #{tpu_custom_call.1} parent=0
    _
  %s4 = ssub.s32 1, %s2
  %s5 = scalar_select 0, %s4, %s2
  $region1: #{tpu_custom_call.1} parent=0
    #allocation2 [shape = 'u8[32768]{0}', space=vmem, size = 0x8000, scoped, tag = 'output window, operand 0']
    #allocation3 [shape = 's32[2]{0}', space=sflag, size = 0x8, scoped, tag = 'scoped memory for tpu_custom_call.1']
    %6 = vsyncpa [#allocation3], 0
    %s7 = scalar_lea.sflag [#allocation3], 1
    %8 = vsyncpa %s7, 0
    loop: start=0, step=1, limit=4
    $region2: #{tpu_custom_call.1} parent=1 // loop_pre_header
      _
    $region3: #{tpu_custom_call.1} parent=1 // loop_header
      %s10 = sphi 0, %s14
      %p11 = scmp.ge.s32.totalorder %s10, 4
      %s20 = sphi 0, %s22
      %s23 = sphi 0, %s20
      %s24 = sphi 0, %s23
      %s40 = sphi 0, %s24
      %s46 = sphi 0, %s48
      %s49 = sphi 0, %s46
      %s50 = sphi 0, %s49
      %s66 = sphi 0, %s50
    $region4: #{tpu_custom_call.1} parent=1 // loop_header_branch
      %13 = sbr.rel (%p11) target = $region8
    $region5: #{tpu_custom_call.1} parent=1 // loop_body
      %s15 = ssub.s32 %s10, 1
      %s16 = ssub.s32 %s10, 2
      %s17 = sadd.s32 %s10, 1
      %s18 = ssub.s32 %s10, %s17
      %p19 = scmp.eq.s32.totalorder %s18, 0
      %s21 = sadd.s32 %s20, 1
      %s22 = scalar_select %p19, %s20, %s21
      %p25 = pneg %p19
      %p26 = scmp.eq.s32.totalorder %s10, 1
      %p27 = por %p25, %p26
      %p28 = scmp.ne.s32.totalorder %s20, %s23
      %p29 = scmp.eq.s32.totalorder %s10, 0
      %p30 = por %p28, %p29
      %p31 = scmp.ne.s32.totalorder %s20, %s23
      %p32 = scmp.eq.s32.totalorder %s15, 1
      %p33 = por %p31, %p32
      %p34 = scmp.ne.s32.totalorder %s23, %s24
      %p35 = scmp.eq.s32.totalorder %s15, 0
      %p36 = por %p34, %p35
      %p37 = scmp.ne.s32.totalorder %s23, %s24
      %p38 = scmp.eq.s32.totalorder %s16, 1
      %p39 = por %p37, %p38
      %p41 = scmp.ne.s32.totalorder %s24, %s40
      %p42 = scmp.eq.s32.totalorder %s16, 0
      %p43 = por %p41, %p42
      %s44 = ssub.s32 %s10, %s17
      %p45 = scmp.eq.s32.totalorder %s44, 0
      %s47 = sadd.s32 %s46, 1
      %s48 = scalar_select %p45, %s46, %s47
      %p51 = pneg %p45
      %p52 = scmp.eq.s32.totalorder %s10, 1
      %p53 = por %p51, %p52
      %p54 = scmp.ne.s32.totalorder %s46, %s49
      %p55 = scmp.eq.s32.totalorder %s10, 0
      %p56 = por %p54, %p55
      %p57 = scmp.ne.s32.totalorder %s46, %s49
      %p58 = scmp.eq.s32.totalorder %s15, 1
      %p59 = por %p57, %p58
      %p60 = scmp.ne.s32.totalorder %s49, %s50
      %p61 = scmp.eq.s32.totalorder %s15, 0
      %p62 = por %p60, %p61
      %p63 = scmp.ne.s32.totalorder %s49, %s50
      %p64 = scmp.eq.s32.totalorder %s16, 1
      %p65 = por %p63, %p64
      %p67 = scmp.ne.s32.totalorder %s50, %s66
      %p68 = scmp.eq.s32.totalorder %s16, 0
      %p69 = por %p67, %p68
      %p70 = scmp.le.s32.totalorder 1, %s10
      %p71 = scmp.lt.s32.totalorder %s10, 3
      %p72 = pnand %p70, %p71
      %p73 = pneg %p72
      // Predicated region
      $region9: #{tpu_custom_call.1} parent=5 // pred_check
        _
      $region10: #{tpu_custom_call.1} parent=5 // pred_check_branch
        %75 = sbr.rel (%p72) target = $region12
      $region11: #{tpu_custom_call.1} parent=5 // pred_region
        %s76 = ssub.s32 %s10, 1
      $region12: #{tpu_custom_call.1} parent=5 // pred_fallthru
        _
      %p77 = scmp.lt.s32.totalorder %s10, 2
      // Predicated region
      $region13: #{tpu_custom_call.1} parent=5 // pred_check
        %p78 = pneg %p77
      $region14: #{tpu_custom_call.1} parent=5 // pred_check_branch
        %80 = sbr.rel (%p78) target = $region16
      $region15: #{tpu_custom_call.1} parent=5 // pred_region
        // Predicated region
        $region17: #{tpu_custom_call.1} parent=15 // pred_check
          %p81 = pneg %p30
        $region18: #{tpu_custom_call.1} parent=15 // pred_check_branch
          %83 = sbr.rel (%p81) target = $region20
        $region19: #{tpu_custom_call.1} parent=15 // pred_region
          %s84 = smul.u32 4, %s10
          %p85 = scmp.lt.s32.totalorder %s84, 7
          %s86 = scalar_select %p85, %s84, 7
          %s87 = smul.addr %s86, 8
          %s88 = smul.addr %s87, 8
          %s89 = scalar_lea.vmem %s0, %s88
          %s90 = smul.u32 4, %s10
        $region20: #{tpu_custom_call.1} parent=15 // pred_fallthru
          _
      $region16: #{tpu_custom_call.1} parent=5 // pred_fallthru
        _
      %p91 = scmp.le.s32.totalorder 1, %s10
      %p92 = scmp.lt.s32.totalorder %s10, 3
      %p93 = pnand %p91, %p92
      %p94 = pneg %p93
      // Predicated region
      $region21: #{tpu_custom_call.1} parent=5 // pred_check
        _
      $region22: #{tpu_custom_call.1} parent=5 // pred_check_branch
        %96 = sbr.rel (%p93) target = $region24
      $region23: #{tpu_custom_call.1} parent=5 // pred_region
        %s97 = ssub.s32 %s10, 1
        %s98 = smul.u32 4, %s15
        %p99 = scmp.lt.s32.totalorder %s98, 7
        %s100 = scalar_select %p99, %s98, 7
        %s101 = smul.addr %s100, 8
        %s102 = smul.addr %s101, 8
        %s103 = scalar_lea.vmem %s0, %s102
        %p104 = pneg %p36
        %p105 = pneg %p33
        %p106 = pneg %p62
        %p107 = pneg %p59
        %s108 = sand.u32 %s49, 1
        %s109 = scalar_lea.sflag [#allocation3], %s108
        %s110 = sand.u32 %s49, 1
        %s111 = smul.addr %s110, 32
        %s112 = scalar_lea.vmem [#allocation2], %s111
        %s113 = smul.u32 4, %s15
        %p114 = scmp.lt.s32.totalorder %s113, 7
        %s115 = scalar_select %p114, %s113, 7
        %s116 = smul.addr %s115, 8
        %s117 = smul.addr %s116, 8
        %s118 = scalar_lea.vmem %s0, %s117
        %s119 = smul.u32 4, %s15
        %s120 = smul.u32 4, %s15
        %v121 = vld [vmem:[%s118] sm:$0xff]
        %v122 = vld [vmem:[%s118 + $0x40] sm:$0xff]
        %v123 = vld [vmem:[%s118 + $0x80] sm:$0xff]
        %v124 = vld [vmem:[%s118 + $0xc0] sm:$0xff]
        %v125 = vmul.f32 %v121, 0.015625
        %v126 = vmul.f32 %v122, 0.015625
        %v127 = vmul.f32 %v123, 0.015625
        %v128 = vmul.f32 %v124, 0.015625
        %v129 = vadd.f32 %v125, 0.0
        %v130 = vadd.f32 %v126, 0.0
        %v131 = vadd.f32 %v127, 0.0
        %v132 = vadd.f32 %v128, 0.0
        %v133 = vmul.f32 %v121, 0.046875
        %v134 = vmul.f32 %v122, 0.046875
        %v135 = vmul.f32 %v123, 0.046875
        %v136 = vmul.f32 %v124, 0.046875
        %141 = vrot.lane.b32.xlu0 %v133, 127
        %v142 = vpop.permute.xlu0 %141
        %143 = vrot.lane.b32.xlu0 %v134, 127
        %v144 = vpop.permute.xlu0 %143
        %145 = vrot.lane.b32.xlu0 %v135, 127
        %v146 = vpop.permute.xlu0 %145
        %147 = vrot.lane.b32.xlu0 %v136, 127
        %v148 = vpop.permute.xlu0 %147
        %v153 = vadd.f32 %v129, %v142
        %v154 = vadd.f32 %v130, %v144
        %v155 = vadd.f32 %v131, %v146
        %v156 = vadd.f32 %v132, %v148
        %v157 = vld [vmem:[%s118 + $0x1] sm:$0xff]
        %v158 = vld [vmem:[%s118 + $0x41] sm:$0xff]
        %v159 = vld [vmem:[%s118 + $0x81] sm:$0xff]
        %v160 = vld [vmem:[%s118 + $0xc1] sm:$0xff]
        %v161 = vmul.f32 %v157, 0.046875
        %v162 = vmul.f32 %v158, 0.046875
        %v163 = vmul.f32 %v159, 0.046875
        %v164 = vmul.f32 %v160, 0.046875
        %v165 = vadd.f32 %v153, %v161
        %v166 = vadd.f32 %v154, %v162
        %v167 = vadd.f32 %v155, %v163
        %v168 = vadd.f32 %v156, %v164
        %v169 = vmul.f32 %v157, 0.140625
        %v170 = vmul.f32 %v158, 0.140625
        %v171 = vmul.f32 %v159, 0.140625
        %v172 = vmul.f32 %v160, 0.140625
        %177 = vrot.lane.b32.xlu0 %v169, 127
        %v178 = vpop.permute.xlu0 %177
        %179 = vrot.lane.b32.xlu0 %v170, 127
        %v180 = vpop.permute.xlu0 %179
        %181 = vrot.lane.b32.xlu0 %v171, 127
        %v182 = vpop.permute.xlu0 %181
        %183 = vrot.lane.b32.xlu0 %v172, 127
        %v184 = vpop.permute.xlu0 %183
        %v189 = vadd.f32 %v165, %v178
        %v190 = vadd.f32 %v166, %v180
        %v191 = vadd.f32 %v167, %v182
        %v192 = vadd.f32 %v168, %v184
        %s193 = scalar_lea.vmem %s118, 16
        %v194 = vld [vmem:[%s193] sm:$0xff]
        %v195 = vld [vmem:[%s193 + $0x40] sm:$0xff]
        %v196 = vld [vmem:[%s193 + $0x80] sm:$0xff]
        %v197 = vld [vmem:[%s193 + $0xc0] sm:$0xff]
        %v198 = vmul.f32 %v194, 0.046875
        %v199 = vmul.f32 %v195, 0.046875
        %v200 = vmul.f32 %v196, 0.046875
        %v201 = vmul.f32 %v197, 0.046875
        %v202 = vadd.f32 %v189, %v198
        %v203 = vadd.f32 %v190, %v199
        %v204 = vadd.f32 %v191, %v200
        %v205 = vadd.f32 %v192, %v201
        %v206 = vmul.f32 %v194, 0.015625
        %v207 = vmul.f32 %v195, 0.015625
        %v208 = vmul.f32 %v196, 0.015625
        %v209 = vmul.f32 %v197, 0.015625
        %214 = vrot.lane.b32.xlu0 %v206, 127
        %v215 = vpop.permute.xlu0 %214
        %216 = vrot.lane.b32.xlu0 %v207, 127
        %v217 = vpop.permute.xlu0 %216
        %218 = vrot.lane.b32.xlu0 %v208, 127
        %v219 = vpop.permute.xlu0 %218
        %220 = vrot.lane.b32.xlu0 %v209, 127
        %v221 = vpop.permute.xlu0 %220
        %v226 = vadd.f32 %v202, %v215
        %v227 = vadd.f32 %v203, %v217
        %v228 = vadd.f32 %v204, %v219
        %v229 = vadd.f32 %v205, %v221
        %v230 = vld [vmem:[%s193 + $0x1] sm:$0xff]
        %v231 = vld [vmem:[%s193 + $0x41] sm:$0xff]
        %v232 = vld [vmem:[%s193 + $0x81] sm:$0xff]
        %v233 = vld [vmem:[%s193 + $0xc1] sm:$0xff]
        %v234 = vmul.f32 %v230, 0.140625
        %v235 = vmul.f32 %v231, 0.140625
        %v236 = vmul.f32 %v232, 0.140625
        %v237 = vmul.f32 %v233, 0.140625
        %v238 = vadd.f32 %v226, %v234
        %v239 = vadd.f32 %v227, %v235
        %v240 = vadd.f32 %v228, %v236
        %v241 = vadd.f32 %v229, %v237
        %v242 = vmul.f32 %v230, 0.046875
        %v243 = vmul.f32 %v231, 0.046875
        %v244 = vmul.f32 %v232, 0.046875
        %v245 = vmul.f32 %v233, 0.046875
        %250 = vrot.lane.b32.xlu0 %v242, 127
        %v251 = vpop.permute.xlu0 %250
        %252 = vrot.lane.b32.xlu0 %v243, 127
        %v253 = vpop.permute.xlu0 %252
        %254 = vrot.lane.b32.xlu0 %v244, 127
        %v255 = vpop.permute.xlu0 %254
        %256 = vrot.lane.b32.xlu0 %v245, 127
        %v257 = vpop.permute.xlu0 %256
        %v262 = vadd.f32 %v238, %v251
        %v263 = vadd.f32 %v239, %v253
        %v264 = vadd.f32 %v240, %v255
        %v265 = vadd.f32 %v241, %v257
        %s266 = scalar_lea.vmem %s118, 32
        %v267 = vld [vmem:[%s266] sm:$0xff]
        %v268 = vld [vmem:[%s266 + $0x40] sm:$0xff]
        %v269 = vld [vmem:[%s266 + $0x80] sm:$0xff]
        %v270 = vld [vmem:[%s266 + $0xc0] sm:$0xff]
        %v271 = vmul.f32 %v267, 0.046875
        %v272 = vmul.f32 %v268, 0.046875
        %v273 = vmul.f32 %v269, 0.046875
        %v274 = vmul.f32 %v270, 0.046875
        %v275 = vadd.f32 %v262, %v271
        %v276 = vadd.f32 %v263, %v272
        %v277 = vadd.f32 %v264, %v273
        %v278 = vadd.f32 %v265, %v274
        %v279 = vmul.f32 %v267, 0.140625
        %v280 = vmul.f32 %v268, 0.140625
        %v281 = vmul.f32 %v269, 0.140625
        %v282 = vmul.f32 %v270, 0.140625
        %287 = vrot.lane.b32.xlu0 %v279, 127
        %v288 = vpop.permute.xlu0 %287
        %289 = vrot.lane.b32.xlu0 %v280, 127
        %v290 = vpop.permute.xlu0 %289
        %291 = vrot.lane.b32.xlu0 %v281, 127
        %v292 = vpop.permute.xlu0 %291
        %293 = vrot.lane.b32.xlu0 %v282, 127
        %v294 = vpop.permute.xlu0 %293
        %v299 = vadd.f32 %v275, %v288
        %v300 = vadd.f32 %v276, %v290
        %v301 = vadd.f32 %v277, %v292
        %v302 = vadd.f32 %v278, %v294
        %v303 = vld [vmem:[%s266 + $0x1] sm:$0xff]
        %v304 = vld [vmem:[%s266 + $0x41] sm:$0xff]
        %v305 = vld [vmem:[%s266 + $0x81] sm:$0xff]
        %v306 = vld [vmem:[%s266 + $0xc1] sm:$0xff]
        %v307 = vmul.f32 %v303, 0.015625
        %v308 = vmul.f32 %v304, 0.015625
        %v309 = vmul.f32 %v305, 0.015625
        %v310 = vmul.f32 %v306, 0.015625
        %v311 = vadd.f32 %v299, %v307
        %v312 = vadd.f32 %v300, %v308
        %v313 = vadd.f32 %v301, %v309
        %v314 = vadd.f32 %v302, %v310
        %v315 = vmul.f32 %v303, 0.046875
        %v316 = vmul.f32 %v304, 0.046875
        %v317 = vmul.f32 %v305, 0.046875
        %v318 = vmul.f32 %v306, 0.046875
        %323 = vrot.lane.b32.xlu0 %v315, 127
        %v324 = vpop.permute.xlu0 %323
        %325 = vrot.lane.b32.xlu0 %v316, 127
        %v326 = vpop.permute.xlu0 %325
        %327 = vrot.lane.b32.xlu0 %v317, 127
        %v328 = vpop.permute.xlu0 %327
        %329 = vrot.lane.b32.xlu0 %v318, 127
        %v330 = vpop.permute.xlu0 %329
        %v335 = vadd.f32 %v311, %v324
        %v336 = vadd.f32 %v312, %v326
        %v337 = vadd.f32 %v313, %v328
        %v338 = vadd.f32 %v314, %v330
        %s339 = scalar_lea.vmem %s118, 48
        %v340 = vld [vmem:[%s339] sm:$0xff]
        %v341 = vld [vmem:[%s339 + $0x40] sm:$0xff]
        %v342 = vld [vmem:[%s339 + $0x80] sm:$0xff]
        %v343 = vld [vmem:[%s339 + $0xc0] sm:$0xff]
        %v344 = vmul.f32 %v340, 0.140625
        %v345 = vmul.f32 %v341, 0.140625
        %v346 = vmul.f32 %v342, 0.140625
        %v347 = vmul.f32 %v343, 0.140625
        %v348 = vadd.f32 %v335, %v344
        %v349 = vadd.f32 %v336, %v345
        %v350 = vadd.f32 %v337, %v346
        %v351 = vadd.f32 %v338, %v347
        %v352 = vmul.f32 %v340, 0.046875
        %v353 = vmul.f32 %v341, 0.046875
        %v354 = vmul.f32 %v342, 0.046875
        %v355 = vmul.f32 %v343, 0.046875
        %360 = vrot.lane.b32.xlu0 %v352, 127
        %v361 = vpop.permute.xlu0 %360
        %362 = vrot.lane.b32.xlu0 %v353, 127
        %v363 = vpop.permute.xlu0 %362
        %364 = vrot.lane.b32.xlu0 %v354, 127
        %v365 = vpop.permute.xlu0 %364
        %366 = vrot.lane.b32.xlu0 %v355, 127
        %v367 = vpop.permute.xlu0 %366
        %v372 = vadd.f32 %v348, %v361
        %v373 = vadd.f32 %v349, %v363
        %v374 = vadd.f32 %v350, %v365
        %v375 = vadd.f32 %v351, %v367
        %v376 = vld [vmem:[%s339 + $0x1] sm:$0xff]
        %v377 = vld [vmem:[%s339 + $0x41] sm:$0xff]
        %v378 = vld [vmem:[%s339 + $0x81] sm:$0xff]
        %v379 = vld [vmem:[%s339 + $0xc1] sm:$0xff]
        %v380 = vmul.f32 %v376, 0.046875
        %v381 = vmul.f32 %v377, 0.046875
        %v382 = vmul.f32 %v378, 0.046875
        %v383 = vmul.f32 %v379, 0.046875
        %v384 = vadd.f32 %v372, %v380
        %v385 = vadd.f32 %v373, %v381
        %v386 = vadd.f32 %v374, %v382
        %v387 = vadd.f32 %v375, %v383
        %v388 = vmul.f32 %v376, 0.015625
        %v389 = vmul.f32 %v377, 0.015625
        %v390 = vmul.f32 %v378, 0.015625
        %v391 = vmul.f32 %v379, 0.015625
        %396 = vrot.lane.b32.xlu0 %v388, 127
        %v397 = vpop.permute.xlu0 %396
        %398 = vrot.lane.b32.xlu0 %v389, 127
        %v399 = vpop.permute.xlu0 %398
        %400 = vrot.lane.b32.xlu0 %v390, 127
        %v401 = vpop.permute.xlu0 %400
        %402 = vrot.lane.b32.xlu0 %v391, 127
        %v403 = vpop.permute.xlu0 %402
        %v408 = vadd.f32 %v384, %v397
        %v409 = vadd.f32 %v385, %v399
        %v410 = vadd.f32 %v386, %v401
        %v411 = vadd.f32 %v387, %v403
        %vm412 = vcmask 64512
        %413 = vst.msk [vmem:[%s112] sm:$0xff] %vm412, %v408
        %414 = vst.msk [vmem:[%s112 + $0x8] sm:$0xff] %vm412, %v409
        %415 = vst.msk [vmem:[%s112 + $0x10] sm:$0xff] %vm412, %v410
        %416 = vst.msk [vmem:[%s112 + $0x18] sm:$0xff] %vm412, %v411
        %s417 = sand.u32 %s49, 1
        %s418 = scalar_lea.sflag [#allocation3], %s417
        %s419 = sand.u32 %s49, 1
        %s420 = smul.addr %s419, 32
        %s421 = scalar_lea.vmem [#allocation2], %s420
        // Predicated region
        $region25: #{tpu_custom_call.1} parent=23 // pred_check
          %p422 = pneg %p59
        $region26: #{tpu_custom_call.1} parent=23 // pred_check_branch
          %424 = sbr.rel (%p422) target = $region28
        $region27: #{tpu_custom_call.1} parent=23 // pred_region
          %s425 = smul.u32 4, %s15
          %427 = vsyncadd %s418, 0
          %s428 = smul.addr %s425, 8
          %s429 = scalar_lea.hbm %s1, %s428
          %s430 = sshll.u32 %s421, 4
          %s431 = int_to_ptr.vmem [resolvable:$true] %s430
          %s432 = sshll.u32 %s429, 4
          %s433 = int_to_ptr.hbm [resolvable:$true] %s432
          %438 = dma.vmem_to_hbm [thread:$0]  %s431, 512, %s433, %s418, 128, 128, 8
        $region28: #{tpu_custom_call.1} parent=23 // pred_fallthru
          _
      $region24: #{tpu_custom_call.1} parent=5 // pred_fallthru
        _
      %p439 = scmp.le.s32.totalorder 2, %s10
      // Predicated region
      $region29: #{tpu_custom_call.1} parent=5 // pred_check
        %p440 = pneg %p439
      $region30: #{tpu_custom_call.1} parent=5 // pred_check_branch
        %442 = sbr.rel (%p440) target = $region32
      $region31: #{tpu_custom_call.1} parent=5 // pred_region
        %s443 = ssub.s32 %s10, 2
        // Predicated region
        $region33: #{tpu_custom_call.1} parent=31 // pred_check
          %p444 = pneg %p65
        $region34: #{tpu_custom_call.1} parent=31 // pred_check_branch
          %446 = sbr.rel (%p444) target = $region36
        $region35: #{tpu_custom_call.1} parent=31 // pred_region
          %s447 = sand.u32 %s50, 1
          %s448 = scalar_lea.sflag [#allocation3], %s447
          %s449 = sand.u32 %s50, 1
          %s450 = smul.addr %s449, 32
          %s451 = scalar_lea.vmem [#allocation2], %s450
          %453 = dma.done %s448, 512
        $region36: #{tpu_custom_call.1} parent=31 // pred_fallthru
          _
      $region32: #{tpu_custom_call.1} parent=5 // pred_fallthru
        _
    $region6: #{tpu_custom_call.1} parent=1 // loop_footer
      %s14 = sadd.s32 1, %s10
    $region7: #{tpu_custom_call.1} parent=1 // loop_footer_branch
      %9 = sbr.rel target = $region3
    $region8: #{tpu_custom_call.1} parent=1 // loop_exit
      _
    %454 = vsyncpa [#allocation3], 1
    %s455 = scalar_lea.sflag [#allocation3], 1
    %456 = vsyncpa %s455, 1

</llo_original>
